<compile_context>
chip_gen: v7x
topology: tpu7x:2x2x1
jax: 0.10.0
libtpu: 0.0.40
codegen_flags: <defaults>
</compile_context>

<pallas_src>
import functools

import jax
import jax.numpy as jnp
import numpy as np
from jax.experimental import pallas as pl
from jax.experimental.pallas import tpu as pltpu

IN_DIM = 32
MEM_DIM = 32
WORD_DICT_SIZE = 50
MAX_CHILDREN = 8  # width of the child-index table (>= max fan-out in the tree)


# ----------------------------------------------------------------------------
# Pallas kernel: whole-tree ChildSumTreeLSTM forward
#   grid = (num_nodes,)  ("arbitrary": sequential, children before parents)
#   tbl_ref   : SMEM (nodes_pad, MAX_CHILDREN) int32  child ids (sentinel-padded)
#   x_ref     : VMEM (nodes_pad, IN_DIM)              embedded inputs, resident
#   wx_ref    : VMEM (IN_DIM, 4*MEM_DIM)              [W_ioux | W_fx]
#   wh_ref    : VMEM (MEM_DIM, 4*MEM_DIM)             [W_iouh | W_fh]
#   b_ref     : VMEM (1, 4*MEM_DIM)                   [b_iou  | b_f ]
#   state_ref : VMEM (nodes_pad, 2*MEM_DIM)           output slab, [c | h] per node
# ----------------------------------------------------------------------------
def _tree_lstm_kernel(tbl_ref, x_ref, wx_ref, wh_ref, b_ref, state_ref):
    n = pl.program_id(0)
    mem = MEM_DIM

    @pl.when(n == 0)
    def _init():
        # Zero the whole state slab once: gives the zero sentinel row and the
        # zero (c,h) used for leaves / padded child slots.
        state_ref[...] = jnp.zeros_like(state_ref)

    # Gather the (up to MAX_CHILDREN) child states from the resident slab.
    rows = [state_ref[pl.ds(tbl_ref[n, k], 1), :] for k in range(MAX_CHILDREN)]
    child = jnp.concatenate(rows, axis=0)            # (MAX_CHILDREN, 2*mem)
    child_c = child[:, :mem]                         # (MAX_CHILDREN, mem)
    child_h = child[:, mem:]                         # (MAX_CHILDREN, mem)

    x = x_ref[pl.ds(n, 1), :]                        # (1, IN_DIM)

    # Two fused 128-lane-wide matmuls replace the original four.
    xw = jnp.dot(x, wx_ref[...], preferred_element_type=jnp.float32)        # (1, 4*mem)
    hw = jnp.dot(child_h, wh_ref[...], preferred_element_type=jnp.float32)  # (MAXC, 4*mem)

    b = b_ref[...]                                   # (1, 4*mem)
    hsum = jnp.sum(hw, axis=0, keepdims=True)        # (1, 4*mem); [:, :3m] == iouh(sum h)

    iou = xw[:, : 3 * mem] + hsum[:, : 3 * mem] + b[:, : 3 * mem]            # (1, 3*mem)
    i = jax.nn.sigmoid(iou[:, :mem])
    o = jax.nn.sigmoid(iou[:, mem:2 * mem])
    u = jnp.tanh(iou[:, 2 * mem:3 * mem])

    # f_k = sigmoid(fh(h_k) + fx(x) + b_f); padded/leaf rows give f*0 = 0.
    f = jax.nn.sigmoid(hw[:, 3 * mem:] + xw[:, 3 * mem:] + b[:, 3 * mem:])   # (MAXC, mem)
    c = i * u + jnp.sum(f * child_c, axis=0, keepdims=True)                  # (1, mem)
    h = o * jnp.tanh(c)                                                      # (1, mem)

    state_ref[pl.ds(n, 1), :] = jnp.concatenate([c, h], axis=1)              # write [c|h]


@functools.partial(jax.jit, static_argnames=("num_nodes",))
def tree_lstm_call(child_tbl, x_all, w_x, w_h, b, *, num_nodes):
    nodes_pad = x_all.shape[0]
    return pl.pallas_call(
        _tree_lstm_kernel,
        out_shape=jax.ShapeDtypeStruct((nodes_pad, 2 * MEM_DIM), jnp.float32),
        grid_spec=pltpu.PrefetchScalarGridSpec(
            num_scalar_prefetch=1,
            grid=(num_nodes,),
            in_specs=[
                pl.BlockSpec((nodes_pad, IN_DIM), lambda n, tbl: (0, 0)),
                pl.BlockSpec((IN_DIM, 4 * MEM_DIM), lambda n, tbl: (0, 0)),
                pl.BlockSpec((MEM_DIM, 4 * MEM_DIM), lambda n, tbl: (0, 0)),
                pl.BlockSpec((1, 4 * MEM_DIM), lambda n, tbl: (0, 0)),
            ],
            out_specs=pl.BlockSpec((nodes_pad, 2 * MEM_DIM), lambda n, tbl: (0, 0)),
        ),
        compiler_params=pltpu.CompilerParams(dimension_semantics=("arbitrary",)),
    )(child_tbl, x_all, w_x, w_h, b)


# ----------------------------------------------------------------------------
# Parameter initialization (deterministic, PyTorch-Linear-style uniform init)
# ----------------------------------------------------------------------------
def init_params(key):
    ks = jax.random.split(key, 9)

    def linear(kw, kb, fan_in, fan_out):
        bound = 1.0 / np.sqrt(fan_in)
        # PyTorch Linear weight is (out, in); we store it transposed (in, out).
        w_t = jax.random.uniform(kw, (fan_in, fan_out), jnp.float32, -bound, bound)
        bias = jax.random.uniform(kb, (1, fan_out), jnp.float32, -bound, bound)
        return w_t, bias

    embedding = jax.random.normal(ks[0], (WORD_DICT_SIZE, IN_DIM), jnp.float32)
    w_ioux_t, b_ioux = linear(ks[1], ks[2], IN_DIM, 3 * MEM_DIM)
    w_iouh_t, b_iouh = linear(ks[3], ks[4], MEM_DIM, 3 * MEM_DIM)
    w_fx_t, b_fx = linear(ks[5], ks[6], IN_DIM, MEM_DIM)
    w_fh_t, b_fh = linear(ks[7], ks[8], MEM_DIM, MEM_DIM)

    b_iou = b_ioux + b_iouh
    b_f = b_fx + b_fh

    params = dict(
        embedding=embedding,
        # raw pieces (used by the pure-JAX reference)
        w_ioux_t=w_ioux_t, w_iouh_t=w_iouh_t, b_iou=b_iou,
        w_fx_t=w_fx_t, w_fh_t=w_fh_t, b_f=b_f,
        # fused, 128-lane-wide kernel weights (concat done ONCE here, not per call)
        w_x=jnp.concatenate([w_ioux_t, w_fx_t], axis=1),   # (32, 128)
        w_h=jnp.concatenate([w_iouh_t, w_fh_t], axis=1),   # (32, 128)
        b=jnp.concatenate([b_iou, b_f], axis=1),           # (1, 128)
    )
    return params


# ----------------------------------------------------------------------------
# Tree + host-side topology flattening (post-order child-index table)
# ----------------------------------------------------------------------------
class Tree:
    def __init__(self, attribute, children=()):
        self.attribute = int(attribute)
        self.children = list(children)
        self.num_children = len(self.children)
        self.state = None
        self.node_id = -1


def build_topology(tree):
    # TODO(synk): the dynamic tree topology (variable fan-out / depth) has no
    # Pallas equivalent; it is flattened here into a fixed-width index table.
    nodes = []

    def visit(t):
        for c in t.children:
            visit(c)
        t.node_id = len(nodes)
        nodes.append(t)

    visit(tree)
    num_nodes = len(nodes)
    nodes_pad = ((num_nodes + 1 + 7) // 8) * 8          # >= num_nodes + 1, multiple of 8
    sentinel = nodes_pad - 1                             # reserved all-zero state row

    child_tbl = np.full((nodes_pad, MAX_CHILDREN), sentinel, dtype=np.int32)
    word_ids = np.zeros((nodes_pad,), dtype=np.int32)
    for t in nodes:
        assert t.num_children <= MAX_CHILDREN
        word_ids[t.node_id] = t.attribute
        for k, c in enumerate(t.children):
            child_tbl[t.node_id, k] = c.node_id

    return nodes, num_nodes, nodes_pad, jnp.asarray(child_tbl), jnp.asarray(word_ids)


def tree_forward(tree, params):
    """Whole-tree forward: one embedding gather + ONE pallas_call for all nodes."""
    nodes, num_nodes, nodes_pad, child_tbl, word_ids = build_topology(tree)
    x_all = params["embedding"][word_ids]                               # (nodes_pad, 32)
    state = tree_lstm_call(child_tbl, x_all, params["w_x"], params["w_h"], params["b"],
                           num_nodes=num_nodes)                         # (nodes_pad, 64)
    # Attach per-node states (root is the last post-order node).
    for t in nodes:
        c = state[t.node_id:t.node_id + 1, :MEM_DIM]
        h = state[t.node_id:t.node_id + 1, MEM_DIM:]
        t.state = (c, h)
    return tree.state


# ----------------------------------------------------------------------------
# Pure-JAX reference (mirrors the PyTorch recursion exactly) for validation
# ----------------------------------------------------------------------------
def _node_forward_ref(x, child_c, child_h, p):
    child_h_sum = jnp.sum(child_h, axis=0, keepdims=True)
    iou = x @ p["w_ioux_t"] + child_h_sum @ p["w_iouh_t"] + p["b_iou"]
    i = jax.nn.sigmoid(iou[:, :MEM_DIM])
    o = jax.nn.sigmoid(iou[:, MEM_DIM:2 * MEM_DIM])
    u = jnp.tanh(iou[:, 2 * MEM_DIM:])
    f = jax.nn.sigmoid(child_h @ p["w_fh_t"] + x @ p["w_fx_t"] + p["b_f"])
    c = i * u + jnp.sum(f * child_c, axis=0, keepdims=True)
    h = o * jnp.tanh(c)
    return c, h


def tree_forward_ref(tree, params):
    x = params["embedding"][tree.attribute][None, :]
    for sub in tree.children:
        tree_forward_ref(sub, params)
    if tree.num_children == 0:
        child_c = jnp.zeros((1, MEM_DIM), jnp.float32)
        child_h = jnp.zeros((1, MEM_DIM), jnp.float32)
    else:
        child_c = jnp.concatenate([c.state[0] for c in tree.children], axis=0)
        child_h = jnp.concatenate([c.state[1] for c in tree.children], axis=0)
    tree.state = _node_forward_ref(x, child_c, child_h, params)
    return tree.state


def build_example_tree():
    #            1
    #        /   |   \
    #       5    3    12
    #      / \         |
    #     7   9       20
    return Tree(1, [Tree(5, [Tree(7), Tree(9)]), Tree(3), Tree(12, [Tree(20)])])


if __name__ == "__main__":
    params = init_params(jax.random.PRNGKey(0))

    # Pallas whole-tree kernel
    tree = build_example_tree()
    c, h = tree_forward(tree, params)
    c, h = jax.block_until_ready(c), jax.block_until_ready(h)

    # Pure-JAX reference of the same forward pass
    tree_ref = build_example_tree()
    tree_forward_ref(tree_ref, params)

    # Validate every node's (c, h), not just the root.
    def collect(t, out):
        for s in t.children:
            collect(s, out)
        out.append(t)
        return out

    for a, b_ in zip(collect(tree, []), collect(tree_ref, [])):
        np.testing.assert_allclose(np.asarray(a.state[0]), np.asarray(b_.state[0]),
                                   rtol=1e-5, atol=1e-5)
        np.testing.assert_allclose(np.asarray(a.state[1]), np.asarray(b_.state[1]),
                                   rtol=1e-5, atol=1e-5)

    print("KERNEL_OK")
</pallas_src>

<mosaic_0001>
module attributes {stable_mosaic.version = 11 : i64} {
  func.func @_tree_lstm_kernel(%arg0: i32, %arg1: memref<8x8xi32, #tpu.memory_space<smem>>, %arg2: memref<8x32xf32, #tpu.memory_space<vmem>>, %arg3: memref<32x128xf32, #tpu.memory_space<vmem>>, %arg4: memref<32x128xf32, #tpu.memory_space<vmem>>, %arg5: memref<1x128xf32, #tpu.memory_space<vmem>>, %arg6: memref<8x64xf32, #tpu.memory_space<vmem>>) attributes {dimension_semantics = [#tpu.dimension_semantics<arbitrary>], iteration_bounds = array<i64: 7>, scalar_prefetch = 1 : i64, scratch_operands = 0 : i64, tpu.core_type = #tpu.core_type<tc>, window_params = [{pipeline_mode = #tpu.pipeline_mode<synchronous>, transform_indices = @transform_0, window_bounds = array<i64: 8, 32>}, {pipeline_mode = #tpu.pipeline_mode<synchronous>, transform_indices = @transform_1, window_bounds = array<i64: 32, 128>}, {pipeline_mode = #tpu.pipeline_mode<synchronous>, transform_indices = @transform_2, window_bounds = array<i64: 32, 128>}, {pipeline_mode = #tpu.pipeline_mode<synchronous>, transform_indices = @transform_3, window_bounds = array<i64: 1, 128>}, {pipeline_mode = #tpu.pipeline_mode<synchronous>, transform_indices = @transform_4, window_bounds = array<i64: 8, 64>}]} {
    %c0_i32 = arith.constant 0 : i32
    %0 = arith.cmpi eq, %arg0, %c0_i32 : i32
    %1 = arith.extui %0 : i1 to i32
    %c0_i32_0 = arith.constant 0 : i32
    %2 = arith.cmpi ne, %1, %c0_i32_0 : i32
    scf.if %2 {
      %cst_23 = arith.constant 0.000000e+00 : f32
      %88 = vector.broadcast %cst_23 : f32 to vector<8x64xf32>
      %c0_24 = arith.constant 0 : index
      %c0_25 = arith.constant 0 : index
      %89 = vector.load %arg6[%c0_24, %c0_25] : memref<8x64xf32, #tpu.memory_space<vmem>>, vector<8x64xf32>
      tpu.vector_store %arg6[%c0_24, %c0_25], %88 {strides = array<i32>} : memref<8x64xf32, #tpu.memory_space<vmem>>, vector<8x64xf32>,
    } else {
    }
    %3 = arith.index_cast %arg0 : i32 to index
    %c0 = arith.constant 0 : index
    %4 = memref.load %arg1[%3, %c0] : memref<8x8xi32, #tpu.memory_space<smem>>
    %5 = arith.index_cast %4 : i32 to index
    %c0_1 = arith.constant 0 : index
    %6 = vector.load %arg6[%5, %c0_1] : memref<8x64xf32, #tpu.memory_space<vmem>>, vector<1x64xf32>
    %7 = arith.index_cast %arg0 : i32 to index
    %c1 = arith.constant 1 : index
    %8 = memref.load %arg1[%7, %c1] : memref<8x8xi32, #tpu.memory_space<smem>>
    %9 = arith.index_cast %8 : i32 to index
    %c0_2 = arith.constant 0 : index
    %10 = vector.load %arg6[%9, %c0_2] : memref<8x64xf32, #tpu.memory_space<vmem>>, vector<1x64xf32>
    %11 = arith.index_cast %arg0 : i32 to index
    %c2 = arith.constant 2 : index
    %12 = memref.load %arg1[%11, %c2] : memref<8x8xi32, #tpu.memory_space<smem>>
    %13 = arith.index_cast %12 : i32 to index
    %c0_3 = arith.constant 0 : index
    %14 = vector.load %arg6[%13, %c0_3] : memref<8x64xf32, #tpu.memory_space<vmem>>, vector<1x64xf32>
    %15 = arith.index_cast %arg0 : i32 to index
    %c3 = arith.constant 3 : index
    %16 = memref.load %arg1[%15, %c3] : memref<8x8xi32, #tpu.memory_space<smem>>
    %17 = arith.index_cast %16 : i32 to index
    %c0_4 = arith.constant 0 : index
    %18 = vector.load %arg6[%17, %c0_4] : memref<8x64xf32, #tpu.memory_space<vmem>>, vector<1x64xf32>
    %19 = arith.index_cast %arg0 : i32 to index
    %c4 = arith.constant 4 : index
    %20 = memref.load %arg1[%19, %c4] : memref<8x8xi32, #tpu.memory_space<smem>>
    %21 = arith.index_cast %20 : i32 to index
    %c0_5 = arith.constant 0 : index
    %22 = vector.load %arg6[%21, %c0_5] : memref<8x64xf32, #tpu.memory_space<vmem>>, vector<1x64xf32>
    %23 = arith.index_cast %arg0 : i32 to index
    %c5 = arith.constant 5 : index
    %24 = memref.load %arg1[%23, %c5] : memref<8x8xi32, #tpu.memory_space<smem>>
    %25 = arith.index_cast %24 : i32 to index
    %c0_6 = arith.constant 0 : index
    %26 = vector.load %arg6[%25, %c0_6] : memref<8x64xf32, #tpu.memory_space<vmem>>, vector<1x64xf32>
    %27 = arith.index_cast %arg0 : i32 to index
    %c6 = arith.constant 6 : index
    %28 = memref.load %arg1[%27, %c6] : memref<8x8xi32, #tpu.memory_space<smem>>
    %29 = arith.index_cast %28 : i32 to index
    %c0_7 = arith.constant 0 : index
    %30 = vector.load %arg6[%29, %c0_7] : memref<8x64xf32, #tpu.memory_space<vmem>>, vector<1x64xf32>
    %31 = arith.index_cast %arg0 : i32 to index
    %c7 = arith.constant 7 : index
    %32 = memref.load %arg1[%31, %c7] : memref<8x8xi32, #tpu.memory_space<smem>>
    %33 = arith.index_cast %32 : i32 to index
    %c0_8 = arith.constant 0 : index
    %34 = vector.load %arg6[%33, %c0_8] : memref<8x64xf32, #tpu.memory_space<vmem>>, vector<1x64xf32>
    %35 = tpu.concatenate %6, %10, %14, %18, %22, %26, %30, %34 in 0 : vector<1x64xf32>, vector<1x64xf32>, vector<1x64xf32>, vector<1x64xf32>, vector<1x64xf32>, vector<1x64xf32>, vector<1x64xf32>, vector<1x64xf32> -> vector<8x64xf32>
    %36 = vector.extract_strided_slice %35 {offsets = [0, 0], sizes = [8, 32], strides = [1, 1]} : vector<8x64xf32> to vector<8x32xf32>
    %37 = vector.extract_strided_slice %35 {offsets = [0, 32], sizes = [8, 32], strides = [1, 1]} : vector<8x64xf32> to vector<8x32xf32>
    %38 = arith.index_cast %arg0 : i32 to index
    %c0_9 = arith.constant 0 : index
    %39 = vector.load %arg2[%38, %c0_9] : memref<8x32xf32, #tpu.memory_space<vmem>>, vector<1x32xf32>
    %c0_10 = arith.constant 0 : index
    %c0_11 = arith.constant 0 : index
    %40 = vector.load %arg3[%c0_10, %c0_11] : memref<32x128xf32, #tpu.memory_space<vmem>>, vector<32x128xf32>
    %cst = arith.constant dense<0.000000e+00> : vector<1x128xf32>
    %41 = tpu.matmul %39, %40, %cst {dimension_numbers = #tpu.dot_dimension_numbers<[1], [0], [0], [1], [0, 0, 1, 1], [], []>} : vector<1x32xf32>, vector<32x128xf32>, vector<1x128xf32> -> vector<1x128xf32>
    %c0_12 = arith.constant 0 : index
    %c0_13 = arith.constant 0 : index
    %42 = vector.load %arg4[%c0_12, %c0_13] : memref<32x128xf32, #tpu.memory_space<vmem>>, vector<32x128xf32>
    %cst_14 = arith.constant dense<0.000000e+00> : vector<8x128xf32>
    %43 = tpu.matmul %37, %42, %cst_14 {dimension_numbers = #tpu.dot_dimension_numbers<[1], [0], [0], [1], [0, 0, 1, 1], [], []>} : vector<8x32xf32>, vector<32x128xf32>, vector<8x128xf32> -> vector<8x128xf32>
    %c0_15 = arith.constant 0 : index
    %c0_16 = arith.constant 0 : index
    %44 = vector.load %arg5[%c0_15, %c0_16] : memref<1x128xf32, #tpu.memory_space<vmem>>, vector<1x128xf32>
    %cst_17 = arith.constant dense<0.000000e+00> : vector<128xf32>
    %45 = vector.multi_reduction <add>, %43, %cst_17 [0] : vector<8x128xf32> to vector<128xf32>
    %46 = vector.shape_cast %45 : vector<128xf32> to vector<1x128xf32>
    %47 = vector.extract_strided_slice %41 {offsets = [0, 0], sizes = [1, 96], strides = [1, 1]} : vector<1x128xf32> to vector<1x96xf32>
    %48 = vector.extract_strided_slice %46 {offsets = [0, 0], sizes = [1, 96], strides = [1, 1]} : vector<1x128xf32> to vector<1x96xf32>
    %49 = arith.addf %47, %48 : vector<1x96xf32>
    %50 = vector.extract_strided_slice %44 {offsets = [0, 0], sizes = [1, 96], strides = [1, 1]} : vector<1x128xf32> to vector<1x96xf32>
    %51 = arith.addf %49, %50 : vector<1x96xf32>
    %52 = vector.extract_strided_slice %51 {offsets = [0, 0], sizes = [1, 32], strides = [1, 1]} : vector<1x96xf32> to vector<1x32xf32>
    %53 = arith.negf %52 : vector<1x32xf32>
    %54 = math.exp %53 : vector<1x32xf32>
    %cst_18 = arith.constant 1.000000e+00 : f32
    %55 = vector.broadcast %cst_18 : f32 to vector<1x32xf32>
    %56 = arith.addf %55, %54 : vector<1x32xf32>
    %57 = arith.divf %55, %56 : vector<1x32xf32>
    %58 = vector.extract_strided_slice %51 {offsets = [0, 32], sizes = [1, 32], strides = [1, 1]} : vector<1x96xf32> to vector<1x32xf32>
    %59 = arith.negf %58 : vector<1x32xf32>
    %60 = math.exp %59 : vector<1x32xf32>
    %cst_19 = arith.constant 1.000000e+00 : f32
    %61 = vector.broadcast %cst_19 : f32 to vector<1x32xf32>
    %62 = arith.addf %61, %60 : vector<1x32xf32>
    %63 = arith.divf %61, %62 : vector<1x32xf32>
    %64 = vector.extract_strided_slice %51 {offsets = [0, 64], sizes = [1, 32], strides = [1, 1]} : vector<1x96xf32> to vector<1x32xf32>
    %65 = math.tanh %64 : vector<1x32xf32>
    %66 = vector.extract_strided_slice %43 {offsets = [0, 96], sizes = [8, 32], strides = [1, 1]} : vector<8x128xf32> to vector<8x32xf32>
    %67 = vector.extract_strided_slice %41 {offsets = [0, 96], sizes = [1, 32], strides = [1, 1]} : vector<1x128xf32> to vector<1x32xf32>
    %68 = vector.broadcast %67 : vector<1x32xf32> to vector<8x32xf32>
    %69 = arith.addf %66, %68 : vector<8x32xf32>
    %70 = vector.extract_strided_slice %44 {offsets = [0, 96], sizes = [1, 32], strides = [1, 1]} : vector<1x128xf32> to vector<1x32xf32>
    %71 = vector.broadcast %70 : vector<1x32xf32> to vector<8x32xf32>
    %72 = arith.addf %69, %71 : vector<8x32xf32>
    %73 = arith.negf %72 : vector<8x32xf32>
    %74 = math.exp %73 : vector<8x32xf32>
    %cst_20 = arith.constant 1.000000e+00 : f32
    %75 = vector.broadcast %cst_20 : f32 to vector<8x32xf32>
    %76 = arith.addf %75, %74 : vector<8x32xf32>
    %77 = arith.divf %75, %76 : vector<8x32xf32>
    %78 = arith.mulf %57, %65 : vector<1x32xf32>
    %79 = arith.mulf %77, %36 : vector<8x32xf32>
    %cst_21 = arith.constant dense<0.000000e+00> : vector<32xf32>
    %80 = vector.multi_reduction <add>, %79, %cst_21 [0] : vector<8x32xf32> to vector<32xf32>
    %81 = vector.shape_cast %80 : vector<32xf32> to vector<1x32xf32>
    %82 = arith.addf %78, %81 : vector<1x32xf32>
    %83 = math.tanh %82 : vector<1x32xf32>
    %84 = arith.mulf %63, %83 : vector<1x32xf32>
    %85 = tpu.concatenate %82, %84 in 1 : vector<1x32xf32>, vector<1x32xf32> -> vector<1x64xf32>
    %86 = arith.index_cast %arg0 : i32 to index
    %c0_22 = arith.constant 0 : index
    %87 = vector.load %arg6[%86, %c0_22] : memref<8x64xf32, #tpu.memory_space<vmem>>, vector<1x64xf32>
    tpu.vector_store %arg6[%86, %c0_22], %85 {strides = array<i32>} : memref<8x64xf32, #tpu.memory_space<vmem>>, vector<1x64xf32>,
    return
  }
  func.func @transform_0(%arg0: i32, %arg1: memref<8x8xi32, #tpu.memory_space<smem>>) -> (i32, i32) {
    %c0_i32 = arith.constant 0 : i32
    %c0_i32_0 = arith.constant 0 : i32
    %c0_i32_1 = arith.constant 0 : i32
    return %c0_i32, %c0_i32_0 : i32, i32
  }
  func.func @transform_1(%arg0: i32, %arg1: memref<8x8xi32, #tpu.memory_space<smem>>) -> (i32, i32) {
    %c0_i32 = arith.constant 0 : i32
    %c0_i32_0 = arith.constant 0 : i32
    %c0_i32_1 = arith.constant 0 : i32
    return %c0_i32, %c0_i32_0 : i32, i32
  }
  func.func @transform_2(%arg0: i32, %arg1: memref<8x8xi32, #tpu.memory_space<smem>>) -> (i32, i32) {
    %c0_i32 = arith.constant 0 : i32
    %c0_i32_0 = arith.constant 0 : i32
    %c0_i32_1 = arith.constant 0 : i32
    return %c0_i32, %c0_i32_0 : i32, i32
  }
  func.func @transform_3(%arg0: i32, %arg1: memref<8x8xi32, #tpu.memory_space<smem>>) -> (i32, i32) {
    %c0_i32 = arith.constant 0 : i32
    %c0_i32_0 = arith.constant 0 : i32
    %c0_i32_1 = arith.constant 0 : i32
    return %c0_i32, %c0_i32_0 : i32, i32
  }
  func.func @transform_4(%arg0: i32, %arg1: memref<8x8xi32, #tpu.memory_space<smem>>) -> (i32, i32) {
    %c0_i32 = arith.constant 0 : i32
    %c0_i32_0 = arith.constant 0 : i32
    %c0_i32_1 = arith.constant 0 : i32
    return %c0_i32, %c0_i32_0 : i32, i32
  }
}

</mosaic_0001>

<llo_original>
// kernel: tree_lstm_call.1
$region0: #{tree_lstm_call.1}
  #allocation0 [shape = 'u32[]', space=smem, size = 0x4, offset = 0x4, fixed_abs, tag = 'smem constant byte address 0x4 - core index']
  #allocation1 [shape = 'u32[144,128]{1,0:T(1,128)}', space=vmem, size = 0x12000, scoped, tag = 'internal scratch']
  #allocation2 [shape = 's32[1]{0}', space=sflag, size = 0x4, scoped, tag = 'scoped memory for tree_lstm_call.1']
  #allocation3 [shape = 'u8[4096]{0}', space=smem, size = 0x1000, scoped, tag = 'prefetched SMEM operand 0']
  %s0 = inlined_call_operand.hbm [shape: s32[8,8], index: 0, kind: input, shape index: {}]
  %s1 = inlined_call_operand.hbm [shape: f32[8,32], index: 1, kind: input, shape index: {}]
  %s2 = inlined_call_operand.hbm [shape: f32[32,128], index: 2, kind: input, shape index: {}]
  %s3 = inlined_call_operand.hbm [shape: f32[32,128], index: 3, kind: input, shape index: {}]
  %s4 = inlined_call_operand.vmem [shape: f32[1,128], index: 4, kind: input, shape index: {}]
  %s5 = inlined_call_operand.hbm [shape: f32[8,64], index: 5, kind: output, shape index: {}]
  %s6 = sld [smem:[#allocation0]]
  $region65: #{tree_lstm_call.1} parent=0
    _
  %s8 = ssub.s32 1, %s6
  %s9 = scalar_select 0, %s8, %s6
  %11 = dma.hbm_to_smem %s0, 128, [#allocation3], [#allocation2]
  %12 = dma.done [#allocation2], 128
  %13 = sfence
  $region1: #{tree_lstm_call.1} parent=0
    #allocation4 [shape = 'u8[4096]{0}', space=vmem, size = 0x1000, scoped, tag = 'input window, operand 1, single buffered']
    #allocation5 [shape = 's32[2]{0}', space=sflag, size = 0x8, scoped, tag = 'scoped memory for tree_lstm_call.1']
    #allocation6 [shape = 's32[2]{0}', space=sflag, size = 0x8, scoped, tag = 'scoped memory for tree_lstm_call.1']
    #allocation7 [shape = 'u8[16384]{0}', space=vmem, size = 0x4000, scoped, tag = 'input window, operand 2, single buffered']
    #allocation8 [shape = 's32[1]{0}', space=sflag, size = 0x4, scoped, tag = 'scoped memory for tree_lstm_call.1']
    #allocation9 [shape = 'u8[16384]{0}', space=vmem, size = 0x4000, scoped, tag = 'input window, operand 3, single buffered']
    #allocation10 [shape = 'u8[4096]{0}', space=vmem, size = 0x1000, scoped, tag = 'output window, operand 0, single buffered']
    %14 = vsyncpa [#allocation5], 0
    %15 = vsyncpa [#allocation8], 0
    %16 = vsyncpa [#allocation6], 0
    loop: start=0, step=1, limit=9
    $region2: #{tree_lstm_call.1} parent=1 // loop_pre_header
      _
    $region3: #{tree_lstm_call.1} parent=1 // loop_header
      %s18 = sphi 0, %s22
      %p19 = scmp.ge.s32.totalorder %s18, 9
      %s26 = sphi 0, %s26
      %s28 = sphi 0, %s26
      %s29 = sphi 0, %s28
      %s43 = sphi 0, %s29
      %s47 = sphi 0, %s47
      %s49 = sphi 0, %s47
      %s50 = sphi 0, %s49
      %s64 = sphi 0, %s50
      %s68 = sphi 0, %s68
      %s70 = sphi 0, %s68
      %s71 = sphi 0, %s70
      %s85 = sphi 0, %s71
      %s89 = sphi 0, %s89
      %s91 = sphi 0, %s89
      %s92 = sphi 0, %s91
      %s106 = sphi 0, %s92
      %s110 = sphi 0, %s110
      %s112 = sphi 0, %s110
      %s113 = sphi 0, %s112
      %s127 = sphi 0, %s113
    $region4: #{tree_lstm_call.1} parent=1 // loop_header_branch
      %21 = sbr.rel (%p19) target = $region8
    $region5: #{tree_lstm_call.1} parent=1 // loop_body
      %s23 = ssub.s32 %s18, 1
      %s24 = ssub.s32 %s18, 2
      %s25 = sadd.s32 %s18, 1
      %s27 = sadd.s32 %s26, 1
      %p30 = scmp.eq.s32.totalorder %s18, 6
      %p31 = scmp.ne.s32.totalorder %s26, %s28
      %p32 = scmp.eq.s32.totalorder %s18, 0
      %p33 = por %p31, %p32
      %p34 = scmp.ne.s32.totalorder %s26, %s28
      %p35 = scmp.eq.s32.totalorder %s23, 6
      %p36 = por %p34, %p35
      %p37 = scmp.ne.s32.totalorder %s28, %s29
      %p38 = scmp.eq.s32.totalorder %s23, 0
      %p39 = por %p37, %p38
      %p40 = scmp.ne.s32.totalorder %s28, %s29
      %p41 = scmp.eq.s32.totalorder %s24, 6
      %p42 = por %p40, %p41
      %p44 = scmp.ne.s32.totalorder %s29, %s43
      %p45 = scmp.eq.s32.totalorder %s24, 0
      %p46 = por %p44, %p45
      %s48 = sadd.s32 %s47, 1
      %p51 = scmp.eq.s32.totalorder %s18, 6
      %p52 = scmp.ne.s32.totalorder %s47, %s49
      %p53 = scmp.eq.s32.totalorder %s18, 0
      %p54 = por %p52, %p53
      %p55 = scmp.ne.s32.totalorder %s47, %s49
      %p56 = scmp.eq.s32.totalorder %s23, 6
      %p57 = por %p55, %p56
      %p58 = scmp.ne.s32.totalorder %s49, %s50
      %p59 = scmp.eq.s32.totalorder %s23, 0
      %p60 = por %p58, %p59
      %p61 = scmp.ne.s32.totalorder %s49, %s50
      %p62 = scmp.eq.s32.totalorder %s24, 6
      %p63 = por %p61, %p62
      %p65 = scmp.ne.s32.totalorder %s50, %s64
      %p66 = scmp.eq.s32.totalorder %s24, 0
      %p67 = por %p65, %p66
      %s69 = sadd.s32 %s68, 1
      %p72 = scmp.eq.s32.totalorder %s18, 6
      %p73 = scmp.ne.s32.totalorder %s68, %s70
      %p74 = scmp.eq.s32.totalorder %s18, 0
      %p75 = por %p73, %p74
      %p76 = scmp.ne.s32.totalorder %s68, %s70
      %p77 = scmp.eq.s32.totalorder %s23, 6
      %p78 = por %p76, %p77
      %p79 = scmp.ne.s32.totalorder %s70, %s71
      %p80 = scmp.eq.s32.totalorder %s23, 0
      %p81 = por %p79, %p80
      %p82 = scmp.ne.s32.totalorder %s70, %s71
      %p83 = scmp.eq.s32.totalorder %s24, 6
      %p84 = por %p82, %p83
      %p86 = scmp.ne.s32.totalorder %s71, %s85
      %p87 = scmp.eq.s32.totalorder %s24, 0
      %p88 = por %p86, %p87
      %s90 = sadd.s32 %s89, 1
      %p93 = scmp.eq.s32.totalorder %s18, 6
      %p94 = scmp.ne.s32.totalorder %s89, %s91
      %p95 = scmp.eq.s32.totalorder %s18, 0
      %p96 = por %p94, %p95
      %p97 = scmp.ne.s32.totalorder %s89, %s91
      %p98 = scmp.eq.s32.totalorder %s23, 6
      %p99 = por %p97, %p98
      %p100 = scmp.ne.s32.totalorder %s91, %s92
      %p101 = scmp.eq.s32.totalorder %s23, 0
      %p102 = por %p100, %p101
      %p103 = scmp.ne.s32.totalorder %s91, %s92
      %p104 = scmp.eq.s32.totalorder %s24, 6
      %p105 = por %p103, %p104
      %p107 = scmp.ne.s32.totalorder %s92, %s106
      %p108 = scmp.eq.s32.totalorder %s24, 0
      %p109 = por %p107, %p108
      %s111 = sadd.s32 %s110, 1
      %p114 = scmp.eq.s32.totalorder %s18, 6
      %p115 = scmp.ne.s32.totalorder %s110, %s112
      %p116 = scmp.eq.s32.totalorder %s18, 0
      %p117 = por %p115, %p116
      %p118 = scmp.ne.s32.totalorder %s110, %s112
      %p119 = scmp.eq.s32.totalorder %s23, 6
      %p120 = por %p118, %p119
      %p121 = scmp.ne.s32.totalorder %s112, %s113
      %p122 = scmp.eq.s32.totalorder %s23, 0
      %p123 = por %p121, %p122
      %p124 = scmp.ne.s32.totalorder %s112, %s113
      %p125 = scmp.eq.s32.totalorder %s24, 6
      %p126 = por %p124, %p125
      %p128 = scmp.ne.s32.totalorder %s113, %s127
      %p129 = scmp.eq.s32.totalorder %s24, 0
      %p130 = por %p128, %p129
      %p131 = scmp.le.s32.totalorder 1, %s18
      %p132 = scmp.lt.s32.totalorder %s18, 8
      %p133 = pnand %p131, %p132
      %p134 = pneg %p133
      // Predicated region
      $region9: #{tree_lstm_call.1} parent=5 // pred_check
        _
      $region10: #{tree_lstm_call.1} parent=5 // pred_check_branch
        %136 = sbr.rel (%p133) target = $region12
      $region11: #{tree_lstm_call.1} parent=5 // pred_region
        %s137 = ssub.s32 %s18, 1
        // Predicated region
        $region13: #{tree_lstm_call.1} parent=11 // pred_check
          %p138 = pneg %p39
        $region14: #{tree_lstm_call.1} parent=11 // pred_check_branch
          %140 = sbr.rel (%p138) target = $region16
        $region15: #{tree_lstm_call.1} parent=11 // pred_region
          %s142 = ssub.s32 128, 128
          %143 = vsyncadd [#allocation5], %s142
          %s145 = sshll.u32 [#allocation4], 4
          %s146 = int_to_ptr.vmem [resolvable:$true] %s145
          %148 = dma.hbm_to_vmem [thread:$0]  %s1, 128, %s146, [#allocation5]
        $region16: #{tree_lstm_call.1} parent=11 // pred_fallthru
          _
        // Predicated region
        $region17: #{tree_lstm_call.1} parent=11 // pred_check
          %p149 = pneg %p60
        $region18: #{tree_lstm_call.1} parent=11 // pred_check_branch
          %151 = sbr.rel (%p149) target = $region20
        $region19: #{tree_lstm_call.1} parent=11 // pred_region
          %s153 = ssub.s32 512, 512
          %154 = vsyncadd [#allocation8], %s153
          %s155 = sshll.u32 [#allocation7], 4
          %s156 = int_to_ptr.vmem [resolvable:$true] %s155
          %161 = dma.hbm_to_vmem [thread:$0]  %s2, 512, %s156, [#allocation8], 128, 128, 8
        $region20: #{tree_lstm_call.1} parent=11 // pred_fallthru
          _
        // Predicated region
        $region21: #{tree_lstm_call.1} parent=11 // pred_check
          %p162 = pneg %p81
        $region22: #{tree_lstm_call.1} parent=11 // pred_check_branch
          %164 = sbr.rel (%p162) target = $region24
        $region23: #{tree_lstm_call.1} parent=11 // pred_region
          %s166 = ssub.s32 512, 512
          %167 = vsyncadd [#allocation8], %s166
          %s168 = sshll.u32 [#allocation9], 4
          %s169 = int_to_ptr.vmem [resolvable:$true] %s168
          %174 = dma.hbm_to_vmem [thread:$0]  %s3, 512, %s169, [#allocation8], 128, 128, 8
        $region24: #{tree_lstm_call.1} parent=11 // pred_fallthru
          _
        // Predicated region
        $region25: #{tree_lstm_call.1} parent=11 // pred_check
          %p175 = pneg %p102
        $region26: #{tree_lstm_call.1} parent=11 // pred_check_branch
          %177 = sbr.rel (%p175) target = $region28
        $region27: #{tree_lstm_call.1} parent=11 // pred_region
          _
        $region28: #{tree_lstm_call.1} parent=11 // pred_fallthru
          _
      $region12: #{tree_lstm_call.1} parent=5 // pred_fallthru
        _
      %p178 = scmp.lt.s32.totalorder %s18, 7
      // Predicated region
      $region29: #{tree_lstm_call.1} parent=5 // pred_check
        %p179 = pneg %p178
      $region30: #{tree_lstm_call.1} parent=5 // pred_check_branch
        %181 = sbr.rel (%p179) target = $region32
      $region31: #{tree_lstm_call.1} parent=5 // pred_region
        _
      $region32: #{tree_lstm_call.1} parent=5 // pred_fallthru
        _
      %p182 = scmp.le.s32.totalorder 1, %s18
      %p183 = scmp.lt.s32.totalorder %s18, 8
      %p184 = pnand %p182, %p183
      %p185 = pneg %p184
      // Predicated region
      $region33: #{tree_lstm_call.1} parent=5 // pred_check
        _
      $region34: #{tree_lstm_call.1} parent=5 // pred_check_branch
        %187 = sbr.rel (%p184) target = $region36
      $region35: #{tree_lstm_call.1} parent=5 // pred_region
        %s188 = ssub.s32 %s18, 1
        // Predicated region
        $region37: #{tree_lstm_call.1} parent=35 // pred_check
          %p189 = pneg %p39
        $region38: #{tree_lstm_call.1} parent=35 // pred_check_branch
          %191 = sbr.rel (%p189) target = $region40
        $region39: #{tree_lstm_call.1} parent=35 // pred_region
          %192 = dma.done [#allocation5], 128
        $region40: #{tree_lstm_call.1} parent=35 // pred_fallthru
          _
        // Predicated region
        $region41: #{tree_lstm_call.1} parent=35 // pred_check
          %p193 = pneg %p60
        $region42: #{tree_lstm_call.1} parent=35 // pred_check_branch
          %195 = sbr.rel (%p193) target = $region44
        $region43: #{tree_lstm_call.1} parent=35 // pred_region
          %196 = dma.done [#allocation8], 512
        $region44: #{tree_lstm_call.1} parent=35 // pred_fallthru
          _
        // Predicated region
        $region45: #{tree_lstm_call.1} parent=35 // pred_check
          %p197 = pneg %p81
        $region46: #{tree_lstm_call.1} parent=35 // pred_check_branch
          %199 = sbr.rel (%p197) target = $region48
        $region47: #{tree_lstm_call.1} parent=35 // pred_region
          %200 = dma.done [#allocation8], 512
        $region48: #{tree_lstm_call.1} parent=35 // pred_fallthru
          _
        %p201 = pneg %p39
        %p202 = pneg %p36
        %p203 = pneg %p60
        %p204 = pneg %p57
        %p205 = pneg %p81
        %p206 = pneg %p78
        %p207 = pneg %p102
        %p208 = pneg %p99
        %p209 = pneg %p123
        %p210 = pneg %p120
        %p211 = scmp.eq.s32.totalorder %s23, 0
        // Predicated region
        $region49: #{tree_lstm_call.1} parent=35 // pred_check
          %p212 = pneg %p211
        $region50: #{tree_lstm_call.1} parent=35 // pred_check_branch
          %214 = sbr.rel (%p212) target = $region52
        $region51: #{tree_lstm_call.1} parent=35 // pred_region
          %vm215 = vcmask 523264
          %216 = vst.msk [vmem:[#allocation10] sm:$0xff] %vm215, 0.0
        $region52: #{tree_lstm_call.1} parent=35 // pred_fallthru
          _
        %s217 = smul.u32 %s23, 128
        %s218 = sld [smem:[#allocation3 + %s217]]
        %s219 = scalar_lea.vmem [#allocation10], %s218
        %v220 = vld [vmem:[%s219] sm:$0x1]
        %s221 = sadd.s32 %s217, 1
        %s222 = sld [smem:[#allocation3 + %s221]]
        %s223 = scalar_lea.vmem [#allocation10], %s222
        %v224 = vld [vmem:[%s223] sm:$0x1]
        %s225 = sadd.s32 %s217, 2
        %s226 = sld [smem:[#allocation3 + %s225]]
        %s227 = scalar_lea.vmem [#allocation10], %s226
        %v228 = vld [vmem:[%s227] sm:$0x1]
        %s229 = sadd.s32 %s217, 3
        %s230 = sld [smem:[#allocation3 + %s229]]
        %s231 = scalar_lea.vmem [#allocation10], %s230
        %v232 = vld [vmem:[%s231] sm:$0x1]
        %s233 = sadd.s32 %s217, 4
        %s234 = sld [smem:[#allocation3 + %s233]]
        %s235 = scalar_lea.vmem [#allocation10], %s234
        %v236 = vld [vmem:[%s235] sm:$0x1]
        %s237 = sadd.s32 %s217, 5
        %s238 = sld [smem:[#allocation3 + %s237]]
        %s239 = scalar_lea.vmem [#allocation10], %s238
        %v240 = vld [vmem:[%s239] sm:$0x1]
        %s241 = sadd.s32 %s217, 6
        %s242 = sld [smem:[#allocation3 + %s241]]
        %s243 = scalar_lea.vmem [#allocation10], %s242
        %v244 = vld [vmem:[%s243] sm:$0x1]
        %s245 = sadd.s32 %s217, 7
        %s246 = sld [smem:[#allocation3 + %s245]]
        %s247 = scalar_lea.vmem [#allocation10], %s246
        %v248 = vld [vmem:[%s247] sm:$0x1]
        %v250 = vrot.slane %v224, 7
        %v253 = vrot.slane %v228, 6
        %v256 = vrot.slane %v232, 5
        %v259 = vrot.slane %v236, 4
        %v262 = vrot.slane %v240, 3
        %v265 = vrot.slane %v244, 2
        %v268 = vrot.slane %v248, 1
        %vm270 = vcmask 1040384
        %v271 = vsel %vm270, %v220, %v250
        %vm272 = vcmask 1041408
        %v273 = vsel %vm272, %v271, %v253
        %vm274 = vcmask 1042432
        %v275 = vsel %vm274, %v273, %v256
        %vm276 = vcmask 1043456
        %v277 = vsel %vm276, %v275, %v259
        %vm278 = vcmask 1044480
        %v279 = vsel %vm278, %v277, %v262
        %vm280 = vcmask 1045504
        %v281 = vsel %vm280, %v279, %v265
        %vm282 = vcmask 1046528
        %v283 = vsel %vm282, %v281, %v268
        %s284 = scalar_lea.vmem [#allocation4], %s23
        %v285 = vld [vmem:[%s284] sm:$0x1]
        %v286 = vld [vmem:[#allocation7] sm:$0xff]
        %v287 = vld [vmem:[#allocation7 + $0x8] sm:$0xff]
        %v288 = vld [vmem:[#allocation7 + $0x10] sm:$0xff]
        %v289 = vld [vmem:[#allocation7 + $0x18] sm:$0xff]
        %vm290 = vcmask 261120
        %v292 = vsel %vm290, %v285, 0
        %294 = vmatprep.subr.mxu0 0.0
        %295 = vmatpush1.msra.mxu0 %v286
        %296 = vmatprep.subr.mxu0 0.0
        %297 = vmatpush1.msra.mxu0 %v287
        %298 = vmatprep.subr.mxu0 0.0
        %299 = vmatpush1.msra.mxu0 %v288
        %300 = vmatprep.subr.mxu0 0.0
        %301 = vmatpush1.msra.mxu0 %v289
        %302 = vmatprep.subr.mxu0 0.0
        %303 = vmatpush1.msra.mxu0 0.0
        %304 = vmatprep.subr.mxu0 0.0
        %305 = vmatpush1.msra.mxu0 0.0
        %306 = vmatprep.subr.mxu0 0.0
        %307 = vmatpush1.msra.mxu0 0.0
        %308 = vmatprep.subr.mxu0 0.0
        %309 = vmatpush1.msra.mxu0 0.0
        %310 = vmatprep.subr.mxu0 0.0
        %311 = vmatpush1.msra.mxu0 0.0
        %312 = vmatprep.subr.mxu0 0.0
        %313 = vmatpush1.msra.mxu0 0.0
        %314 = vmatprep.subr.mxu0 0.0
        %315 = vmatpush1.msra.mxu0 0.0
        %316 = vmatprep.subr.mxu0 0.0
        %317 = vmatpush1.msra.mxu0 0.0
        %318 = vmatprep.subr.mxu0 0.0
        %319 = vmatpush1.msra.mxu0 0.0
        %320 = vmatprep.subr.mxu0 0.0
        %321 = vmatpush1.msra.mxu0 0.0
        %322 = vmatprep.subr.mxu0 0.0
        %323 = vmatpush1.msra.mxu0 0.0
        %324 = vmatprep.subr.mxu0 0.0
        %325 = vmatpush1.msra.mxu0 0.0
        %326 = vmatprep.subr.mxu0 0.0
        %327 = vmatpush1.msra.mxu0 0.0
        %328 = vmatprep.subr.mxu0 0.0
        %329 = vmatpush1.msra.mxu0 0.0
        %330 = vmatprep.subr.mxu0 0.0
        %331 = vmatpush1.msra.mxu0 0.0
        %332 = vmatprep.subr.mxu0 0.0
        %333 = vmatpush1.msra.mxu0 0.0
        %334 = vmatprep.subr.mxu0 0.0
        %335 = vmatpush1.msra.mxu0 0.0
        %336 = vmatprep.subr.mxu0 0.0
        %337 = vmatpush1.msra.mxu0 0.0
        %338 = vmatprep.subr.mxu0 0.0
        %339 = vmatpush1.msra.mxu0 0.0
        %340 = vmatprep.subr.mxu0 0.0
        %341 = vmatpush1.msra.mxu0 0.0
        %342 = vmatprep.subr.mxu0 0.0
        %343 = vmatpush1.msra.mxu0 0.0
        %344 = vmatprep.subr.mxu0 0.0
        %345 = vmatpush1.msra.mxu0 0.0
        %346 = vmatprep.subr.mxu0 0.0
        %347 = vmatpush1.msra.mxu0 0.0
        %348 = vmatprep.subr.mxu0 0.0
        %349 = vmatpush1.msra.mxu0 0.0
        %350 = vmatprep.subr.mxu0 0.0
        %351 = vmatpush1.msra.mxu0 0.0
        %352 = vmatprep.subr.mxu0 0.0
        %353 = vmatpush1.msra.mxu0 0.0
        %354 = vmatprep.subr.mxu0 0.0
        %355 = vmatpush1.msra.mxu0 0.0
        %356 = vmatprep.subr.mxu0 0.0
        %357 = vmatpush1.msra.mxu0 0.0
        %358 = vmatprep.mubr.f32.mxu0 0.0
        %359 = vmatmul.mubr.f32.gmra.mrb[0].mxu0 %v292
        %v360 = vpop.f32.mrb[0].mxu0
        %v361 = vadd.f32 0.0, %v360
        %v362 = vpop.f32.mrb[0].mxu0
        %363 = vdwg.mxu0
        %v364 = vld [vmem:[#allocation9] sm:$0xff]
        %v365 = vld [vmem:[#allocation9 + $0x8] sm:$0xff]
        %v366 = vld [vmem:[#allocation9 + $0x10] sm:$0xff]
        %v367 = vld [vmem:[#allocation9 + $0x18] sm:$0xff]
        %369 = vrot.lane.b32.xlu0 %v283, 96
        %v370 = vpop.permute.xlu0 %369
        %v371 = vsel %vm290, %v370, 0
        %373 = vmatprep.subr.mxu0 0.0
        %374 = vmatpush1.msra.mxu0 %v364
        %375 = vmatprep.subr.mxu0 0.0
        %376 = vmatpush1.msra.mxu0 %v365
        %377 = vmatprep.subr.mxu0 0.0
        %378 = vmatpush1.msra.mxu0 %v366
        %379 = vmatprep.subr.mxu0 0.0
        %380 = vmatpush1.msra.mxu0 %v367
        %381 = vmatprep.subr.mxu0 0.0
        %382 = vmatpush1.msra.mxu0 0.0
        %383 = vmatprep.subr.mxu0 0.0
        %384 = vmatpush1.msra.mxu0 0.0
        %385 = vmatprep.subr.mxu0 0.0
        %386 = vmatpush1.msra.mxu0 0.0
        %387 = vmatprep.subr.mxu0 0.0
        %388 = vmatpush1.msra.mxu0 0.0
        %389 = vmatprep.subr.mxu0 0.0
        %390 = vmatpush1.msra.mxu0 0.0
        %391 = vmatprep.subr.mxu0 0.0
        %392 = vmatpush1.msra.mxu0 0.0
        %393 = vmatprep.subr.mxu0 0.0
        %394 = vmatpush1.msra.mxu0 0.0
        %395 = vmatprep.subr.mxu0 0.0
        %396 = vmatpush1.msra.mxu0 0.0
        %397 = vmatprep.subr.mxu0 0.0
        %398 = vmatpush1.msra.mxu0 0.0
        %399 = vmatprep.subr.mxu0 0.0
        %400 = vmatpush1.msra.mxu0 0.0
        %401 = vmatprep.subr.mxu0 0.0
        %402 = vmatpush1.msra.mxu0 0.0
        %403 = vmatprep.subr.mxu0 0.0
        %404 = vmatpush1.msra.mxu0 0.0
        %405 = vmatprep.subr.mxu0 0.0
        %406 = vmatpush1.msra.mxu0 0.0
        %407 = vmatprep.subr.mxu0 0.0
        %408 = vmatpush1.msra.mxu0 0.0
        %409 = vmatprep.subr.mxu0 0.0
        %410 = vmatpush1.msra.mxu0 0.0
        %411 = vmatprep.subr.mxu0 0.0
        %412 = vmatpush1.msra.mxu0 0.0
        %413 = vmatprep.subr.mxu0 0.0
        %414 = vmatpush1.msra.mxu0 0.0
        %415 = vmatprep.subr.mxu0 0.0
        %416 = vmatpush1.msra.mxu0 0.0
        %417 = vmatprep.subr.mxu0 0.0
        %418 = vmatpush1.msra.mxu0 0.0
        %419 = vmatprep.subr.mxu0 0.0
        %420 = vmatpush1.msra.mxu0 0.0
        %421 = vmatprep.subr.mxu0 0.0
        %422 = vmatpush1.msra.mxu0 0.0
        %423 = vmatprep.subr.mxu0 0.0
        %424 = vmatpush1.msra.mxu0 0.0
        %425 = vmatprep.subr.mxu0 0.0
        %426 = vmatpush1.msra.mxu0 0.0
        %427 = vmatprep.subr.mxu0 0.0
        %428 = vmatpush1.msra.mxu0 0.0
        %429 = vmatprep.subr.mxu0 0.0
        %430 = vmatpush1.msra.mxu0 0.0
        %431 = vmatprep.subr.mxu0 0.0
        %432 = vmatpush1.msra.mxu0 0.0
        %433 = vmatprep.subr.mxu0 0.0
        %434 = vmatpush1.msra.mxu0 0.0
        %435 = vmatprep.subr.mxu0 0.0
        %436 = vmatpush1.msra.mxu0 0.0
        %437 = vmatprep.mubr.f32.mxu0 0.0
        %438 = vmatmul.mubr.f32.gmra.mrb[0].mxu0 %v371
        %v439 = vpop.f32.mrb[0].mxu0
        %v440 = vadd.f32 0.0, %v439
        %v441 = vpop.f32.mrb[0].mxu0
        %442 = vdwg.mxu0
        %v443 = vld [vmem:[%s4] sm:$0x1]
        %v444 = vrot.slane %v440, 4
        %v445 = vadd.f32 %v440, %v444
        %v446 = vrot.slane %v445, 2
        %v447 = vadd.f32 %v445, %v446
        %v448 = vrot.slane %v447, 1
        %v449 = vadd.f32 %v447, %v448
        %v450 = vadd.f32 %v361, %v449
        %v451 = vadd.f32 %v450, %v443
        %v452 = vxor.u32 %v451, 2147483648
        %v453 = vmul.f32 %v452, 1.442695
        %v454 = vpow.pop %v453
        %v455 = vadd.f32 %v454, 1.0
        %v456 = vrcp.pop %v455
        %v457 = vmul.f32 1.0, %v456
        %v458 = vtanh.pop %v451
        %v459 = vlaneseq
        %v460 = vshrl.u32 %v459, 7
        %v461 = vsub.s32 0, %v460
        %v462 = vrot.slane %v361, %v461
        %v463 = vadd.f32 %v440, %v462
        %v465 = vlaneseq
        %v466 = vshrl.u32 %v465, 7
        %v467 = vsub.s32 0, %v466
        %v468 = vrot.slane %v443, %v467
        %v470 = vadd.f32 %v463, %v468
        %v471 = vxor.u32 %v470, 2147483648
        %v472 = vmul.f32 %v471, 1.442695
        %v473 = vpow.pop %v472
        %v474 = vadd.f32 %v473, 1.0
        %v475 = vrcp.pop %v474
        %v476 = vmul.f32 1.0, %v475
        %478 = vrot.lane.b32.xlu0 %v458, 64
        %v479 = vpop.permute.xlu0 %478
        %v481 = vmul.f32 %v457, %v479
        %v483 = vmul.f32 %v476, %v370
        %vm484 = vcmask 1048320
        %v485 = vsel %vm484, %v483, 0.0
        %v486 = vrot.slane %v485, 4
        %v487 = vadd.f32 %v485, %v486
        %v488 = vrot.slane %v487, 2
        %v489 = vadd.f32 %v487, %v488
        %v490 = vrot.slane %v489, 1
        %v491 = vadd.f32 %v489, %v490
        %493 = vrot.lane.b32.xlu0 %v491, 32
        %v494 = vpop.permute.xlu0 %493
        %v496 = vadd.f32 %v481, %v494
        %v497 = vtanh.pop %v496
        %499 = vrot.lane.b32.xlu0 %v497, 32
        %v500 = vpop.permute.xlu0 %499
        %v502 = vmul.f32 %v457, %v500
        %v503 = vsel %vm290, %v496, %v502
        %s504 = scalar_lea.vmem [#allocation10], %s23
        %vm505 = vcmask 516096
        %506 = vst.msk [vmem:[%s504] sm:$0x1] %vm505, %v503
        // Predicated region
        $region53: #{tree_lstm_call.1} parent=35 // pred_check
          %p507 = pneg %p120
        $region54: #{tree_lstm_call.1} parent=35 // pred_check_branch
          %509 = sbr.rel (%p507) target = $region56
        $region55: #{tree_lstm_call.1} parent=35 // pred_region
          %s511 = ssub.s32 128, 128
          %512 = vsyncadd [#allocation6], %s511
          %s514 = sshll.u32 [#allocation10], 4
          %s515 = int_to_ptr.vmem [resolvable:$true] %s514
          %517 = dma.vmem_to_hbm [thread:$0]  %s515, 128, %s5, [#allocation6]
        $region56: #{tree_lstm_call.1} parent=35 // pred_fallthru
          _
        // Predicated region
        $region57: #{tree_lstm_call.1} parent=35 // pred_check
          %p518 = pneg %p120
        $region58: #{tree_lstm_call.1} parent=35 // pred_check_branch
          %520 = sbr.rel (%p518) target = $region60
        $region59: #{tree_lstm_call.1} parent=35 // pred_region
          %521 = dma.done [#allocation6], 128
        $region60: #{tree_lstm_call.1} parent=35 // pred_fallthru
          _
      $region36: #{tree_lstm_call.1} parent=5 // pred_fallthru
        _
      %p522 = scmp.le.s32.totalorder 2, %s18
      // Predicated region
      $region61: #{tree_lstm_call.1} parent=5 // pred_check
        %p523 = pneg %p522
      $region62: #{tree_lstm_call.1} parent=5 // pred_check_branch
        %525 = sbr.rel (%p523) target = $region64
      $region63: #{tree_lstm_call.1} parent=5 // pred_region
        %s526 = ssub.s32 %s18, 2
      $region64: #{tree_lstm_call.1} parent=5 // pred_fallthru
        _
    $region6: #{tree_lstm_call.1} parent=1 // loop_footer
      %s22 = sadd.s32 1, %s18
    $region7: #{tree_lstm_call.1} parent=1 // loop_footer_branch
      %17 = sbr.rel target = $region3
    $region8: #{tree_lstm_call.1} parent=1 // loop_exit
      _
    %527 = vsyncpa [#allocation5], 1
    %s528 = scalar_lea.sflag [#allocation5], 1
    %529 = vsyncpa %s528, 1
    %530 = vsyncpa [#allocation8], 1
    %531 = vsyncpa [#allocation6], 1
    %s532 = scalar_lea.sflag [#allocation6], 1
    %533 = vsyncpa %s532, 1

</llo_original>
